<compile_context>
chip_gen: v6e
topology: v6e:2x2x1
jax: 0.10.0
libtpu: 0.0.40
codegen_flags: <defaults>
</compile_context>

<pallas_src>
import functools

import jax
import jax.numpy as jnp
from jax import lax
from jax.experimental import pallas as pl
from jax.experimental.pallas import tpu as pltpu


# ----------------------------------------------------------------------------- helpers

def _round_up(x, m):
    return ((x + m - 1) // m) * m


def _pow06(x):
    # x ** 0.6 for x >= 0 via exp/log (EUP), exact zero handling.
    return jnp.where(x > 0, jnp.exp(0.6 * jnp.log(jnp.maximum(x, 1e-30))), 0.0)


def _giou_pairwise(a_box, b_box_t):
    """Pairwise generalized IoU (kernel-side, approx reciprocal divides).

    a_box:   [N, 4] xyxy (valid boxes: x2 >= x1, y2 >= y1)
    b_box_t: [4, M] xyxy (transposed, entity axis on lanes)
    returns: [N, M]
    """
    eps = 1e-9
    ax1, ay1, ax2, ay2 = (a_box[:, 0:1], a_box[:, 1:2], a_box[:, 2:3], a_box[:, 3:4])
    bx1, by1, bx2, by2 = (b_box_t[0:1, :], b_box_t[1:2, :], b_box_t[2:3, :], b_box_t[3:4, :])
    a_area = (ax2 - ax1) * (ay2 - ay1)          # [N, 1]
    b_area = (bx2 - bx1) * (by2 - by1)          # [1, M]
    inter = (jnp.maximum(jnp.minimum(ax2, bx2) - jnp.maximum(ax1, bx1), 0.0) *
             jnp.maximum(jnp.minimum(ay2, by2) - jnp.maximum(ay1, by1), 0.0))
    union = a_area + b_area - inter
    iou = inter * pl.reciprocal(jnp.maximum(union, eps), approx=True)
    # Enclosing box of two valid boxes is always valid -> no clamps needed.
    c_area = ((jnp.maximum(ax2, bx2) - jnp.minimum(ax1, bx1)) *
              (jnp.maximum(ay2, by2) - jnp.minimum(ay1, by1)))
    return iou - (c_area - union) * pl.reciprocal(jnp.maximum(c_area, eps), approx=True)


def _giou_elementwise(a, b):
    """Element-wise generalized IoU for gathered box pairs (plain JAX, exact divides)."""
    ax1, ay1, ax2, ay2 = a[..., 0], a[..., 1], a[..., 2], a[..., 3]
    bx1, by1, bx2, by2 = b[..., 0], b[..., 1], b[..., 2], b[..., 3]
    a_area = (ax2 - ax1) * (ay2 - ay1)
    b_area = (bx2 - bx1) * (by2 - by1)
    inter = (jnp.maximum(jnp.minimum(ax2, bx2) - jnp.maximum(ax1, bx1), 0.0) *
             jnp.maximum(jnp.minimum(ay2, by2) - jnp.maximum(ay1, by1), 0.0))
    union = a_area + b_area - inter
    iou = inter / union
    c_area = ((jnp.maximum(ax2, bx2) - jnp.minimum(ax1, bx1)) *
              (jnp.maximum(ay2, by2) - jnp.minimum(ay1, by1)))
    return iou - (c_area - union) / c_area


def box_cxcywh_to_xyxy(b):
    cx, cy, w, h = b[..., 0], b[..., 1], b[..., 2], b[..., 3]
    return jnp.stack([cx - 0.5 * w, cy - 0.5 * h, cx + 0.5 * w, cy + 0.5 * h], axis=-1)


def box_xyxy_to_cxcywh(b):
    x1, y1, x2, y2 = b[..., 0], b[..., 1], b[..., 2], b[..., 3]
    return jnp.stack([(x1 + x2) / 2, (y1 + y2) / 2, x2 - x1, y2 - y1], axis=-1)


# ----------------------------------------------------------------------------- kernel

def _match_scores_kernel(rel_slab_ref, rel_dist_ref, ent_slab_ref, ent_prob_t_ref,
                         scr_ref, *, e_valid):
    """Entity-aware matching scores (== get_matching_scores_entities_aware).

    One grid step handles one (image, sub-or-obj) row block.

    rel_slab_ref    [Rp, 8]    cols: 0-1 rel-vector endpoint (x,y), 2-5 rel box xyxy,
                               6 class-dist inverse L2 norm, 7 padding (all image scale)
    rel_dist_ref    [Rp, C]    bf16 relation-head class distribution
    ent_slab_ref    [8, Ep]    rows: 0-1 entity centers (cx;cy), 2 score^0.6,
                               3 class-dist inverse L2 norm, 4-7 box xyxy (transposed)
    ent_prob_t_ref  [C, Ep]    bf16 entity class distribution (transposed)
    scr_ref         [Rp, Ep]   bf16 matching scores; lanes >= e_valid written as -inf
    """
    ent = ent_slab_ref[...]                              # [8, Ep]
    ent_cx = ent[0:1, :]
    ent_cy = ent[1:2, :]
    ent_score_p = ent[2:3, :]                            # already ** 0.6
    ent_inv_norm = ent[3:4, :]
    ent_box_t = ent[4:8, :]

    rel = rel_slab_ref[...]                              # [Rp, 8]
    rel_cx = rel[:, 0:1]
    rel_cy = rel[:, 1:2]
    rel_box = rel[:, 2:6]
    rel_inv_norm = rel[:, 6:7]

    # --- relation-vector / entity-center absolute distances ------------------
    dist = jnp.abs(rel_cx - ent_cx) + jnp.abs(rel_cy - ent_cy)          # [Rp, Ep]
    match_vec_n_conf = ent_score_p * pl.reciprocal(dist + 1.0, approx=True)

    # --- cosine similarity: bf16 MXU matmul + precomputed inverse norms ------
    s = jnp.dot(rel_dist_ref[...], ent_prob_t_ref[...],
                preferred_element_type=jnp.float32)                     # [Rp, Ep]
    match_cls = _pow06(s * rel_inv_norm * ent_inv_norm)

    # --- pairwise GIoU (rel boxes vs entity boxes) ----------------------------
    match_giou = jnp.maximum(_giou_pairwise(rel_box, ent_box_t), 0.0)

    scr = match_cls * match_giou * match_vec_n_conf
    lane = lax.broadcasted_iota(jnp.int32, scr.shape, 1)
    scr = jnp.where(lane < e_valid, scr, -jnp.inf)       # mask padded entity columns
    scr_ref[...] = scr.astype(scr_ref.dtype)


# ----------------------------------------------------------------------------- wrapper

def matching_scores_entities_aware_batched(rel_vec, rel_sub_box, rel_obj_box,
                                           rel_sub_dist, rel_obj_dist,
                                           ent_cnter, ent_score, ent_box, ent_prob):
    """Single batched pallas_call.  Returns (match_scr_sub, match_scr_obj) as bf16
    [B, R, E_pad] with padded entity columns already set to -inf (safe for top_k)."""
    f32, bf16 = jnp.float32, jnp.bfloat16
    B, R, _ = rel_vec.shape
    E = ent_score.shape[1]
    C = ent_prob.shape[-1]
    E_pad = max(128, _round_up(E, 128))
    Rp = max(8, _round_up(R, 8))
    pad_r = Rp - R
    eps = 1e-8

    # --- relation-side slabs (sub block rows [0,Rp), obj block rows [Rp,2Rp)) ---
    sub_dist = rel_sub_dist.astype(f32)
    obj_dist = rel_obj_dist.astype(f32)
    sub_inv = lax.rsqrt(jnp.maximum(jnp.sum(sub_dist * sub_dist, -1, keepdims=True), eps * eps))
    obj_inv = lax.rsqrt(jnp.maximum(jnp.sum(obj_dist * obj_dist, -1, keepdims=True), eps * eps))

    sub_slab = jnp.concatenate(
        [rel_vec[..., 0:2], rel_sub_box, sub_inv, jnp.zeros_like(sub_inv)], axis=-1)  # [B,R,8]
    obj_slab = jnp.concatenate(
        [rel_vec[..., 2:4], rel_obj_box, obj_inv, jnp.zeros_like(obj_inv)], axis=-1)
    rel_slab = jnp.concatenate(
        [jnp.pad(sub_slab, ((0, 0), (0, pad_r), (0, 0))),
         jnp.pad(obj_slab, ((0, 0), (0, pad_r), (0, 0)))], axis=1).astype(f32)        # [B,2Rp,8]

    rel_dist = jnp.concatenate(
        [jnp.pad(sub_dist, ((0, 0), (0, pad_r), (0, 0))),
         jnp.pad(obj_dist, ((0, 0), (0, pad_r), (0, 0)))], axis=1).astype(bf16)       # [B,2Rp,C]

    # --- entity-side slabs (lane axis = entities, padded to E_pad) ------------
    ent_prob_f = ent_prob.astype(f32)
    ent_inv = lax.rsqrt(jnp.maximum(jnp.sum(ent_prob_f * ent_prob_f, -1), eps * eps))  # [B,E]
    ent_score_p = jnp.power(jnp.maximum(ent_score.astype(f32), 0.0), 0.6)
    ent_slab = jnp.concatenate([
        jnp.swapaxes(ent_cnter.astype(f32), 1, 2),        # [B,2,E] cx;cy
        ent_score_p[:, None, :],                          # [B,1,E]
        ent_inv[:, None, :],                              # [B,1,E]
        jnp.swapaxes(ent_box.astype(f32), 1, 2),          # [B,4,E] xyxy
    ], axis=1)                                            # [B,8,E]
    ent_slab = jnp.pad(ent_slab, ((0, 0), (0, 0), (0, E_pad - E)))

    ent_prob_t = jnp.pad(jnp.swapaxes(ent_prob_f, 1, 2),
                         ((0, 0), (0, 0), (0, E_pad - E))).astype(bf16)               # [B,C,Ep]

    kernel = functools.partial(_match_scores_kernel, e_valid=E)

    scr = pl.pallas_call(
        kernel,
        grid=(B, 2),   # second axis splits sub/obj row blocks -> both v7x TCs busy at B==1
        in_specs=[
            pl.BlockSpec((None, Rp, 8), lambda b, r: (b, r, 0)),
            pl.BlockSpec((None, Rp, C), lambda b, r: (b, r, 0)),
            pl.BlockSpec((None, 8, E_pad), lambda b, r: (b, 0, 0)),
            pl.BlockSpec((None, C, E_pad), lambda b, r: (b, 0, 0)),
        ],
        out_specs=pl.BlockSpec((None, Rp, E_pad), lambda b, r: (b, r, 0)),
        out_shape=jax.ShapeDtypeStruct((B, 2 * Rp, E_pad), bf16),
        compiler_params=pltpu.CompilerParams(
            dimension_semantics=("parallel", "parallel")),
    )(rel_slab, rel_dist, ent_slab, ent_prob_t)

    return scr[:, :R, :], scr[:, Rp:Rp + R, :]


# ----------------------------------------------------------------------------- glue (plain JAX, batched)

class RelPostProcessConfig:
    NUM_ENT_CLASSES = 32
    NUM_ENTITIES_PAIRING = 3
    NUM_MAX_REL_PRED = 20
    OVERLAP_THRES = 0.8


def rel_post_process_forward(outputs, det_res, target_sizes,
                             max_proposal_pairs=300, init_max_match_ent=None,
                             cfg=RelPostProcessConfig):
    """JAX/Pallas port of RelPostProcess.forward (softmax + entity-aware rule_base path)."""
    f32 = jnp.float32
    pred_rel_logits = outputs['pred_rel_logits']             # [B, R, Crel+1]
    pred_rel_vec_raw = outputs['pred_rel_vec']                # [B, R, 4]
    pred_rel_probs = jax.nn.softmax(pred_rel_logits, axis=-1)

    img_h, img_w = target_sizes[:, 0], target_sizes[:, 1]
    scale_fct = jnp.stack([img_w, img_h, img_w, img_h], axis=1)          # [B, 4]
    pred_rel_vec = pred_rel_vec_raw * scale_fct[:, None, :]

    B, R = pred_rel_logits.shape[:2]

    # TODO(synk): assumes every image has the same number of detected entities E;
    #             ragged E would need per-image padding to a common E before stacking.
    ent_score_b = jnp.stack([d['scores'] for d in det_res]).astype(f32)   # [B, E]
    ent_box_b = jnp.stack([d['boxes'] for d in det_res]).astype(f32)      # [B, E, 4] xyxy
    ent_prob_full = jnp.stack([d['prob'] for d in det_res]).astype(f32)   # [B, E, C(+1)]
    ent_prob_b = (ent_prob_full if cfg.NUM_ENT_CLASSES == ent_prob_full.shape[-1]
                  else ent_prob_full[..., :-1])                           # [B, E, C]
    ent_cnter_b = box_xyxy_to_cxcywh(ent_box_b)[..., :2]                  # [B, E, 2]

    pred_rel_sub_box = box_cxcywh_to_xyxy(outputs['pred_rel_sub_box']) * scale_fct[:, None, :]
    pred_rel_obj_box = box_cxcywh_to_xyxy(outputs['pred_rel_obj_box']) * scale_fct[:, None, :]
    pred_rel_sub_dist = jax.nn.softmax(outputs['pred_rel_sub_logits'], axis=-1)[..., :-1]
    pred_rel_obj_dist = jax.nn.softmax(outputs['pred_rel_obj_logits'], axis=-1)[..., :-1]

    # --------- hot path: ONE batched Pallas kernel for the whole mini-batch ---
    match_scr_sub_b, match_scr_obj_b = matching_scores_entities_aware_batched(
        pred_rel_vec, pred_rel_sub_box, pred_rel_obj_box,
        pred_rel_sub_dist, pred_rel_obj_dist,
        ent_cnter_b, ent_score_b, ent_box_b, ent_prob_b)

    E = ent_score_b.shape[1]
    k_init = cfg.NUM_ENTITIES_PAIRING if init_max_match_ent is None else init_max_match_ent
    k = k_init if E > k_init else E

    # batched top_k over entities (padded columns already -inf from the kernel)
    _, sub_ids = jax.lax.top_k(match_scr_sub_b, k)            # [B, R, k]
    _, obj_ids = jax.lax.top_k(match_scr_obj_b, k)
    sub_ids_flat = sub_ids.reshape(B, R * k)
    obj_ids_flat = obj_ids.reshape(B, R * k)

    # --------- relation class probabilities (softmax path, 1 pred per edge) ---
    pred_rel_prob_full = pred_rel_probs[:, :, 1:]             # drop background, [B, R, Crel]
    pred_rel_prob_top = jnp.max(pred_rel_prob_full, axis=-1)             # [B, R]
    pred_rel_labels_top = jnp.argmax(pred_rel_prob_full, axis=-1) + 1    # [B, R]

    pred_rel_prob_rep = jnp.repeat(pred_rel_prob_top, k, axis=1)         # [B, R*k]
    pred_rel_labels_rep = jnp.repeat(pred_rel_labels_top, k, axis=1)     # [B, R*k]
    total_pred_idx = jnp.broadcast_to(jnp.repeat(jnp.arange(R), k)[None, :], (B, R * k))

    ent_score_sub = jnp.take_along_axis(ent_score_b, sub_ids_flat, axis=1)
    ent_score_obj = jnp.take_along_axis(ent_score_b, obj_ids_flat, axis=1)
    rel_trp_scores = pred_rel_prob_rep * ent_score_sub * ent_score_obj   # [B, R*k]

    pred_rel_triplet = jnp.stack([
        sub_ids_flat.astype(f32),                 # SUB_IDX
        obj_ids_flat.astype(f32),                 # OBJ_IDX
        pred_rel_labels_rep.astype(f32),          # REL_LABEL
        rel_trp_scores,                           # REL_TRP_SCR
        pred_rel_prob_rep,                        # REL_PRED_SCR
        total_pred_idx.astype(f32),               # INIT_PROP_IDX
    ], axis=-1)                                   # [B, R*k, 6]
    init_pred_rel_triplet = pred_rel_triplet

    # --------- self-connection / high-overlap suppression ---------------------
    # GIoU computed only for the gathered (sub, obj) pairs, exact divides (no Ep^2 matrix).
    # Original module applies box_cxcywh_to_xyxy to the (already-xyxy) entity boxes; reproduce.
    ent_box_conv = box_cxcywh_to_xyxy(ent_box_b)                          # [B, E, 4]
    sub_boxes = jnp.take_along_axis(ent_box_conv, sub_ids_flat[..., None], axis=1)
    obj_boxes = jnp.take_along_axis(ent_box_conv, obj_ids_flat[..., None], axis=1)
    pair_giou = _giou_elementwise(sub_boxes, obj_boxes)                   # [B, R*k]
    keep = jnp.logical_and(sub_ids_flat != obj_ids_flat, pair_giou < 0.95)

    # post_proc_filtering (static-shape variant): mask removed triplets with -inf,
    # keep the NUM_MAX_REL_PRED highest-scoring ones.
    masked_scores = jnp.where(keep, rel_trp_scores, -jnp.inf)
    n1 = min(cfg.NUM_MAX_REL_PRED, R * k)
    _, top_rel_idx = jax.lax.top_k(masked_scores, n1)                     # [B, n1]
    trp_sel = jnp.take_along_axis(pred_rel_triplet, top_rel_idx[..., None], axis=1)

    # TODO(synk): the greedy sequential `rel_prediction_filtering` (overlap-based duplicate
    # suppression with a data-dependent growing index set) has no clean static-shape
    # Pallas/JAX equivalent and is omitted.

    n2 = min(max_proposal_pairs, n1)
    _, order2 = jax.lax.top_k(trp_sel[..., 3], n2)
    trp_sel = jnp.take_along_axis(trp_sel, order2[..., None], axis=1)     # [B, n2, 6]

    # --------- batched gathers for the result dicts ----------------------------
    def gather_by_init(trp):
        init_idx = trp[..., 5].astype(jnp.int32)                          # [B, N]
        prob_dist = jnp.take_along_axis(pred_rel_probs, init_idx[..., None], axis=1)
        rel_vec_sel = jnp.take_along_axis(pred_rel_vec, init_idx[..., None], axis=1)
        return init_idx, prob_dist, rel_vec_sel

    init_idx_i, prob_i, vec_i = gather_by_init(init_pred_rel_triplet)
    init_idx_s, prob_s, vec_s = gather_by_init(trp_sel)

    def mk(trp, init_idx, prob, vec):
        return {
            'rel_trp': trp[:, :3].astype(jnp.int32),
            'rel_pred_label': trp[:, 2].astype(jnp.int32),
            'rel_score': trp[:, 4],
            'rel_trp_score': trp[:, 3],
            'pred_prob_dist': prob,
            'rel_vec': vec,
            'init_prop_indx': init_idx,
        }

    rel_proposals_predict = []
    init_rel_proposals_predict = []
    for b in range(B):   # cheap slicing only — all heavy ops above are batched
        init_rel_proposals_predict.append(
            mk(init_pred_rel_triplet[b], init_idx_i[b], prob_i[b], vec_i[b]))
        rel_proposals_predict.append(
            mk(trp_sel[b], init_idx_s[b], prob_s[b], vec_s[b]))

    return rel_proposals_predict, init_rel_proposals_predict


# ----------------------------------------------------------------------------- demo

if __name__ == "__main__":
    key = jax.random.PRNGKey(0)
    B, R, E = 2, 8, 8
    C_ENT = RelPostProcessConfig.NUM_ENT_CLASSES      # 32 entity classes
    C_REL = 16                                        # rel classes (+1 background in logits)

    ks = jax.random.split(key, 12)

    outputs = {
        'pred_rel_logits': jax.random.normal(ks[0], (B, R, C_REL + 1), jnp.float32),
        'pred_rel_vec': jax.random.uniform(ks[1], (B, R, 4), jnp.float32, 0.05, 0.95),
        'pred_rel_sub_box': jnp.concatenate([
            jax.random.uniform(ks[2], (B, R, 2), jnp.float32, 0.2, 0.8),   # cx, cy
            jax.random.uniform(ks[3], (B, R, 2), jnp.float32, 0.05, 0.3),  # w, h
        ], axis=-1),
        'pred_rel_obj_box': jnp.concatenate([
            jax.random.uniform(ks[4], (B, R, 2), jnp.float32, 0.2, 0.8),
            jax.random.uniform(ks[5], (B, R, 2), jnp.float32, 0.05, 0.3),
        ], axis=-1),
        'pred_rel_sub_logits': jax.random.normal(ks[6], (B, R, C_ENT + 1), jnp.float32),
        'pred_rel_obj_logits': jax.random.normal(ks[7], (B, R, C_ENT + 1), jnp.float32),
    }

    target_sizes = jnp.array([[480.0, 640.0], [512.0, 600.0]], jnp.float32)   # (h, w)

    det_res = []
    for b in range(B):
        kb = jax.random.split(ks[8 + b], 5)
        h, w = float(target_sizes[b, 0]), float(target_sizes[b, 1])
        x1 = jax.random.uniform(kb[0], (E,), jnp.float32, 0.05 * w, 0.5 * w)
        y1 = jax.random.uniform(kb[1], (E,), jnp.float32, 0.05 * h, 0.5 * h)
        bw = jax.random.uniform(kb[2], (E,), jnp.float32, 0.05 * w, 0.4 * w)
        bh = jax.random.uniform(kb[3], (E,), jnp.float32, 0.05 * h, 0.4 * h)
        boxes = jnp.stack([x1, y1, x1 + bw, y1 + bh], axis=-1)               # xyxy, image scale
        boxes_norm = box_xyxy_to_cxcywh(boxes) / jnp.array([w, h, w, h], jnp.float32)
        prob = jax.nn.softmax(jax.random.normal(kb[4], (E, C_ENT + 1), jnp.float32), axis=-1)
        scores = jnp.max(prob[:, :-1], axis=-1)
        labels = jnp.argmax(prob[:, :-1], axis=-1)
        det_res.append({'scores': scores, 'labels': labels, 'boxes': boxes,
                        'boxes_norm': boxes_norm, 'prob': prob})

    rel_pred, init_rel_pred = rel_post_process_forward(outputs, det_res, target_sizes)
    jax.block_until_ready((rel_pred, init_rel_pred))
    print("KERNEL_OK")
</pallas_src>

<mosaic_0001>
module attributes {stable_mosaic.version = 11 : i64} {
  func.func @_match_scores_kernel(%arg0: i32, %arg1: i32, %arg2: memref<1x8x8xf32, #tpu.memory_space<vmem>>, %arg3: memref<1x8x32xbf16, #tpu.memory_space<vmem>>, %arg4: memref<1x8x128xf32, #tpu.memory_space<vmem>>, %arg5: memref<1x32x128xbf16, #tpu.memory_space<vmem>>, %arg6: memref<1x8x128xbf16, #tpu.memory_space<vmem>>) attributes {dimension_semantics = [#tpu.dimension_semantics<parallel>, #tpu.dimension_semantics<parallel>], iteration_bounds = array<i64: 2, 2>, scalar_prefetch = 0 : i64, scratch_operands = 0 : i64, tpu.core_type = #tpu.core_type<tc>, window_params = [{transform_indices = @transform_0, window_bounds = array<i64: 1, 8, 8>}, {transform_indices = @transform_1, window_bounds = array<i64: 1, 8, 32>}, {transform_indices = @transform_2, window_bounds = array<i64: 1, 8, 128>}, {transform_indices = @transform_3, window_bounds = array<i64: 1, 32, 128>}, {transform_indices = @transform_4, window_bounds = array<i64: 1, 8, 128>}]} {
    %c0 = arith.constant 0 : index
    %c0_0 = arith.constant 0 : index
    %c0_1 = arith.constant 0 : index
    %0 = vector.load %arg4[%c0, %c0_0, %c0_1] : memref<1x8x128xf32, #tpu.memory_space<vmem>>, vector<1x8x128xf32>
    %1 = vector.shape_cast %0 : vector<1x8x128xf32> to vector<8x128xf32>
    %2 = vector.extract_strided_slice %1 {offsets = [0, 0], sizes = [1, 128], strides = [1, 1]} : vector<8x128xf32> to vector<1x128xf32>
    %3 = vector.extract_strided_slice %1 {offsets = [1, 0], sizes = [1, 128], strides = [1, 1]} : vector<8x128xf32> to vector<1x128xf32>
    %4 = vector.extract_strided_slice %1 {offsets = [2, 0], sizes = [1, 128], strides = [1, 1]} : vector<8x128xf32> to vector<1x128xf32>
    %5 = vector.extract_strided_slice %1 {offsets = [3, 0], sizes = [1, 128], strides = [1, 1]} : vector<8x128xf32> to vector<1x128xf32>
    %6 = vector.extract_strided_slice %1 {offsets = [4, 0], sizes = [4, 128], strides = [1, 1]} : vector<8x128xf32> to vector<4x128xf32>
    %c0_2 = arith.constant 0 : index
    %c0_3 = arith.constant 0 : index
    %c0_4 = arith.constant 0 : index
    %7 = vector.load %arg2[%c0_2, %c0_3, %c0_4] : memref<1x8x8xf32, #tpu.memory_space<vmem>>, vector<1x8x8xf32>
    %8 = vector.shape_cast %7 : vector<1x8x8xf32> to vector<8x8xf32>
    %9 = vector.extract_strided_slice %8 {offsets = [0, 0], sizes = [8, 1], strides = [1, 1]} : vector<8x8xf32> to vector<8x1xf32>
    %10 = vector.extract_strided_slice %8 {offsets = [0, 1], sizes = [8, 1], strides = [1, 1]} : vector<8x8xf32> to vector<8x1xf32>
    %11 = vector.extract_strided_slice %8 {offsets = [0, 2], sizes = [8, 4], strides = [1, 1]} : vector<8x8xf32> to vector<8x4xf32>
    %12 = vector.extract_strided_slice %8 {offsets = [0, 6], sizes = [8, 1], strides = [1, 1]} : vector<8x8xf32> to vector<8x1xf32>
    %13 = vector.broadcast %9 : vector<8x1xf32> to vector<8x128xf32>
    %14 = vector.broadcast %2 : vector<1x128xf32> to vector<8x128xf32>
    %15 = arith.subf %13, %14 : vector<8x128xf32>
    %16 = math.absf %15 : vector<8x128xf32>
    %17 = vector.broadcast %10 : vector<8x1xf32> to vector<8x128xf32>
    %18 = vector.broadcast %3 : vector<1x128xf32> to vector<8x128xf32>
    %19 = arith.subf %17, %18 : vector<8x128xf32>
    %20 = math.absf %19 : vector<8x128xf32>
    %21 = arith.addf %16, %20 : vector<8x128xf32>
    %cst = arith.constant 1.000000e+00 : f32
    %22 = vector.broadcast %cst : f32 to vector<8x128xf32>
    %23 = arith.addf %21, %22 : vector<8x128xf32>
    %24 = tpu.reciprocal %23 {approx = true} : vector<8x128xf32> -> vector<8x128xf32>
    %25 = vector.broadcast %4 : vector<1x128xf32> to vector<8x128xf32>
    %26 = arith.mulf %25, %24 : vector<8x128xf32>
    %c0_5 = arith.constant 0 : index
    %c0_6 = arith.constant 0 : index
    %c0_7 = arith.constant 0 : index
    %27 = vector.load %arg3[%c0_5, %c0_6, %c0_7] : memref<1x8x32xbf16, #tpu.memory_space<vmem>>, vector<1x8x32xbf16>
    %28 = vector.shape_cast %27 : vector<1x8x32xbf16> to vector<8x32xbf16>
    %c0_8 = arith.constant 0 : index
    %c0_9 = arith.constant 0 : index
    %c0_10 = arith.constant 0 : index
    %29 = vector.load %arg5[%c0_8, %c0_9, %c0_10] : memref<1x32x128xbf16, #tpu.memory_space<vmem>>, vector<1x32x128xbf16>
    %30 = vector.shape_cast %29 : vector<1x32x128xbf16> to vector<32x128xbf16>
    %cst_11 = arith.constant dense<0.000000e+00> : vector<8x128xf32>
    %31 = tpu.matmul %28, %30, %cst_11 {dimension_numbers = #tpu.dot_dimension_numbers<[1], [0], [0], [1], [0, 0, 1, 1], [], []>} : vector<8x32xbf16>, vector<32x128xbf16>, vector<8x128xf32> -> vector<8x128xf32>
    %32 = vector.broadcast %12 : vector<8x1xf32> to vector<8x128xf32>
    %33 = arith.mulf %31, %32 : vector<8x128xf32>
    %34 = vector.broadcast %5 : vector<1x128xf32> to vector<8x128xf32>
    %35 = arith.mulf %33, %34 : vector<8x128xf32>
    %cst_12 = arith.constant 0.000000e+00 : f32
    %36 = vector.broadcast %cst_12 : f32 to vector<8x128xf32>
    %37 = arith.cmpf ogt, %35, %36 : vector<8x128xf32>
    %cst_13 = arith.constant 1.000000e-30 : f32
    %38 = vector.broadcast %cst_13 : f32 to vector<8x128xf32>
    %39 = arith.maximumf %35, %38 : vector<8x128xf32>
    %40 = math.log %39 : vector<8x128xf32>
    %cst_14 = arith.constant 6.000000e-01 : f32
    %41 = vector.broadcast %cst_14 : f32 to vector<8x128xf32>
    %42 = arith.mulf %41, %40 : vector<8x128xf32>
    %43 = math.exp %42 : vector<8x128xf32>
    %cst_15 = arith.constant 0.000000e+00 : f32
    %44 = vector.broadcast %cst_15 : f32 to vector<8x128xf32>
    %45 = arith.select %37, %43, %44 : vector<8x128xi1>, vector<8x128xf32>
    %46 = vector.extract_strided_slice %11 {offsets = [0, 0], sizes = [8, 1], strides = [1, 1]} : vector<8x4xf32> to vector<8x1xf32>
    %47 = vector.extract_strided_slice %11 {offsets = [0, 1], sizes = [8, 1], strides = [1, 1]} : vector<8x4xf32> to vector<8x1xf32>
    %48 = vector.extract_strided_slice %11 {offsets = [0, 2], sizes = [8, 1], strides = [1, 1]} : vector<8x4xf32> to vector<8x1xf32>
    %49 = vector.extract_strided_slice %11 {offsets = [0, 3], sizes = [8, 1], strides = [1, 1]} : vector<8x4xf32> to vector<8x1xf32>
    %50 = vector.extract_strided_slice %6 {offsets = [0, 0], sizes = [1, 128], strides = [1, 1]} : vector<4x128xf32> to vector<1x128xf32>
    %51 = vector.extract_strided_slice %6 {offsets = [1, 0], sizes = [1, 128], strides = [1, 1]} : vector<4x128xf32> to vector<1x128xf32>
    %52 = vector.extract_strided_slice %6 {offsets = [2, 0], sizes = [1, 128], strides = [1, 1]} : vector<4x128xf32> to vector<1x128xf32>
    %53 = vector.extract_strided_slice %6 {offsets = [3, 0], sizes = [1, 128], strides = [1, 1]} : vector<4x128xf32> to vector<1x128xf32>
    %54 = arith.subf %48, %46 : vector<8x1xf32>
    %55 = arith.subf %49, %47 : vector<8x1xf32>
    %56 = arith.mulf %54, %55 : vector<8x1xf32>
    %57 = arith.subf %52, %50 : vector<1x128xf32>
    %58 = arith.subf %53, %51 : vector<1x128xf32>
    %59 = arith.mulf %57, %58 : vector<1x128xf32>
    %60 = vector.broadcast %48 : vector<8x1xf32> to vector<8x128xf32>
    %61 = vector.broadcast %52 : vector<1x128xf32> to vector<8x128xf32>
    %62 = arith.minimumf %60, %61 : vector<8x128xf32>
    %63 = vector.broadcast %46 : vector<8x1xf32> to vector<8x128xf32>
    %64 = vector.broadcast %50 : vector<1x128xf32> to vector<8x128xf32>
    %65 = arith.maximumf %63, %64 : vector<8x128xf32>
    %66 = arith.subf %62, %65 : vector<8x128xf32>
    %cst_16 = arith.constant 0.000000e+00 : f32
    %67 = vector.broadcast %cst_16 : f32 to vector<8x128xf32>
    %68 = arith.maximumf %66, %67 : vector<8x128xf32>
    %69 = vector.broadcast %49 : vector<8x1xf32> to vector<8x128xf32>
    %70 = vector.broadcast %53 : vector<1x128xf32> to vector<8x128xf32>
    %71 = arith.minimumf %69, %70 : vector<8x128xf32>
    %72 = vector.broadcast %47 : vector<8x1xf32> to vector<8x128xf32>
    %73 = vector.broadcast %51 : vector<1x128xf32> to vector<8x128xf32>
    %74 = arith.maximumf %72, %73 : vector<8x128xf32>
    %75 = arith.subf %71, %74 : vector<8x128xf32>
    %cst_17 = arith.constant 0.000000e+00 : f32
    %76 = vector.broadcast %cst_17 : f32 to vector<8x128xf32>
    %77 = arith.maximumf %75, %76 : vector<8x128xf32>
    %78 = arith.mulf %68, %77 : vector<8x128xf32>
    %79 = vector.broadcast %56 : vector<8x1xf32> to vector<8x128xf32>
    %80 = vector.broadcast %59 : vector<1x128xf32> to vector<8x128xf32>
    %81 = arith.addf %79, %80 : vector<8x128xf32>
    %82 = arith.subf %81, %78 : vector<8x128xf32>
    %cst_18 = arith.constant 9.99999971E-10 : f32
    %83 = vector.broadcast %cst_18 : f32 to vector<8x128xf32>
    %84 = arith.maximumf %82, %83 : vector<8x128xf32>
    %85 = tpu.reciprocal %84 {approx = true} : vector<8x128xf32> -> vector<8x128xf32>
    %86 = arith.mulf %78, %85 : vector<8x128xf32>
    %87 = vector.broadcast %48 : vector<8x1xf32> to vector<8x128xf32>
    %88 = vector.broadcast %52 : vector<1x128xf32> to vector<8x128xf32>
    %89 = arith.maximumf %87, %88 : vector<8x128xf32>
    %90 = vector.broadcast %46 : vector<8x1xf32> to vector<8x128xf32>
    %91 = vector.broadcast %50 : vector<1x128xf32> to vector<8x128xf32>
    %92 = arith.minimumf %90, %91 : vector<8x128xf32>
    %93 = arith.subf %89, %92 : vector<8x128xf32>
    %94 = vector.broadcast %49 : vector<8x1xf32> to vector<8x128xf32>
    %95 = vector.broadcast %53 : vector<1x128xf32> to vector<8x128xf32>
    %96 = arith.maximumf %94, %95 : vector<8x128xf32>
    %97 = vector.broadcast %47 : vector<8x1xf32> to vector<8x128xf32>
    %98 = vector.broadcast %51 : vector<1x128xf32> to vector<8x128xf32>
    %99 = arith.minimumf %97, %98 : vector<8x128xf32>
    %100 = arith.subf %96, %99 : vector<8x128xf32>
    %101 = arith.mulf %93, %100 : vector<8x128xf32>
    %102 = arith.subf %101, %82 : vector<8x128xf32>
    %cst_19 = arith.constant 9.99999971E-10 : f32
    %103 = vector.broadcast %cst_19 : f32 to vector<8x128xf32>
    %104 = arith.maximumf %101, %103 : vector<8x128xf32>
    %105 = tpu.reciprocal %104 {approx = true} : vector<8x128xf32> -> vector<8x128xf32>
    %106 = arith.mulf %102, %105 : vector<8x128xf32>
    %107 = arith.subf %86, %106 : vector<8x128xf32>
    %cst_20 = arith.constant 0.000000e+00 : f32
    %108 = vector.broadcast %cst_20 : f32 to vector<8x128xf32>
    %109 = arith.maximumf %107, %108 : vector<8x128xf32>
    %110 = arith.mulf %45, %109 : vector<8x128xf32>
    %111 = arith.mulf %110, %26 : vector<8x128xf32>
    %112 = tpu.iota {dimensions = array<i32: 1>} : vector<8x128xi32>
    %c8_i32 = arith.constant 8 : i32
    %113 = vector.broadcast %c8_i32 : i32 to vector<8x128xi32>
    %114 = arith.cmpi slt, %112, %113 : vector<8x128xi32>
    %cst_21 = arith.constant 0xFF800000 : f32
    %115 = vector.broadcast %cst_21 : f32 to vector<8x128xf32>
    %116 = arith.select %114, %111, %115 : vector<8x128xi1>, vector<8x128xf32>
    %117 = arith.truncf %116 : vector<8x128xf32> to vector<8x128xbf16>
    %c0_22 = arith.constant 0 : index
    %c0_23 = arith.constant 0 : index
    %c0_24 = arith.constant 0 : index
    %118 = vector.load %arg6[%c0_22, %c0_23, %c0_24] : memref<1x8x128xbf16, #tpu.memory_space<vmem>>, vector<1x8x128xbf16>
    %119 = vector.shape_cast %118 : vector<1x8x128xbf16> to vector<8x128xbf16>
    %120 = vector.shape_cast %117 : vector<8x128xbf16> to vector<1x8x128xbf16>
    tpu.vector_store %arg6[%c0_22, %c0_23, %c0_24], %120 {strides = array<i32>} : memref<1x8x128xbf16, #tpu.memory_space<vmem>>, vector<1x8x128xbf16>,
    return
  }
  func.func @transform_0(%arg0: i32, %arg1: i32) -> (i32, i32, i32) {
    %c0_i32 = arith.constant 0 : i32
    %c0_i32_0 = arith.constant 0 : i32
    return %arg0, %arg1, %c0_i32 : i32, i32, i32
  }
  func.func @transform_1(%arg0: i32, %arg1: i32) -> (i32, i32, i32) {
    %c0_i32 = arith.constant 0 : i32
    %c0_i32_0 = arith.constant 0 : i32
    return %arg0, %arg1, %c0_i32 : i32, i32, i32
  }
  func.func @transform_2(%arg0: i32, %arg1: i32) -> (i32, i32, i32) {
    %c0_i32 = arith.constant 0 : i32
    %c0_i32_0 = arith.constant 0 : i32
    %c0_i32_1 = arith.constant 0 : i32
    return %arg0, %c0_i32, %c0_i32_0 : i32, i32, i32
  }
  func.func @transform_3(%arg0: i32, %arg1: i32) -> (i32, i32, i32) {
    %c0_i32 = arith.constant 0 : i32
    %c0_i32_0 = arith.constant 0 : i32
    %c0_i32_1 = arith.constant 0 : i32
    return %arg0, %c0_i32, %c0_i32_0 : i32, i32, i32
  }
  func.func @transform_4(%arg0: i32, %arg1: i32) -> (i32, i32, i32) {
    %c0_i32 = arith.constant 0 : i32
    %c0_i32_0 = arith.constant 0 : i32
    return %arg0, %arg1, %c0_i32 : i32, i32, i32
  }
}

</mosaic_0001>

<llo_original>
// kernel: tpu_custom_call.1
$region0: #{tpu_custom_call.1}
  #allocation0 [shape = 'u32[]', space=smem, size = 0x4, offset = 0x4, fixed_abs, tag = 'smem constant byte address 0x4 - core index']
  #allocation1 [shape = 'u32[144,128]{1,0:T(1,128)}', space=vmem, size = 0x12000, scoped, tag = 'internal scratch']
  %s0 = inlined_call_operand.vmem [shape: f32[2,16,8], index: 0, kind: input, shape index: {}]
  %s1 = inlined_call_operand.vmem [shape: bf16[2,16,32], index: 1, kind: input, shape index: {}]
  %s2 = inlined_call_operand.hbm [shape: f32[2,8,128], index: 2, kind: input, shape index: {}]
  %s3 = inlined_call_operand.vmem [shape: bf16[2,32,128], index: 3, kind: input, shape index: {}]
  %s4 = inlined_call_operand.hbm [shape: bf16[2,16,128], index: 4, kind: output, shape index: {}]
  %s5 = sld [smem:[#allocation0]]
  $region53: #{tpu_custom_call.1} parent=0
    _
  %s7 = ssub.s32 1, %s5
  %s8 = scalar_select 0, %s7, %s5
  $region1: #{tpu_custom_call.1} parent=0
    #allocation2 [shape = 'u8[8192]{0}', space=vmem, size = 0x2000, scoped, tag = 'input window, operand 2']
    #allocation3 [shape = 's32[2]{0}', space=sflag, size = 0x8, scoped, tag = 'scoped memory for tpu_custom_call.1']
    #allocation4 [shape = 's32[2]{0}', space=sflag, size = 0x8, scoped, tag = 'scoped memory for tpu_custom_call.1']
    #allocation5 [shape = 'u8[4096]{0}', space=vmem, size = 0x1000, scoped, tag = 'output window, operand 0']
    %9 = vsyncpa [#allocation3], 0
    %s10 = scalar_lea.sflag [#allocation3], 1
    %11 = vsyncpa %s10, 0
    %12 = vsyncpa [#allocation4], 0
    %s13 = scalar_lea.sflag [#allocation4], 1
    %14 = vsyncpa %s13, 0
    loop: start=0, step=1, limit=6
    $region2: #{tpu_custom_call.1} parent=1 // loop_pre_header
      _
    $region3: #{tpu_custom_call.1} parent=1 // loop_header
      %s16 = sphi 0, %s20
      %p17 = scmp.ge.s32.totalorder %s16, 6
      %s23 = sphi 0, %s35
      %s24 = sphi 0, %s31
      %s25 = sphi 0, %s23
      %s26 = sphi 0, %s24
      %s27 = sphi 0, %s25
      %s28 = sphi 0, %s26
      %s40 = sphi 0, %s42
      %s43 = sphi 0, %s40
      %s44 = sphi 0, %s43
      %s60 = sphi 0, %s44
      %s68 = sphi 0, %s70
      %s71 = sphi 0, %s68
      %s72 = sphi 0, %s71
      %s88 = sphi 0, %s72
      %s94 = sphi 0, %s96
      %s97 = sphi 0, %s94
      %s98 = sphi 0, %s97
      %s114 = sphi 0, %s98
      %s120 = sphi 0, %s122
      %s123 = sphi 0, %s120
      %s124 = sphi 0, %s123
      %s140 = sphi 0, %s124
      %s148 = sphi 0, %s150
      %s151 = sphi 0, %s148
      %s152 = sphi 0, %s151
      %s168 = sphi 0, %s152
    $region4: #{tpu_custom_call.1} parent=1 // loop_header_branch
      %19 = sbr.rel (%p17) target = $region8
    $region5: #{tpu_custom_call.1} parent=1 // loop_body
      %s21 = ssub.s32 %s16, 1
      %s22 = ssub.s32 %s16, 2
      %s29 = sadd.s32 1, %s24
      %p30 = scmp.ge.s32.totalorder %s29, 2
      %s31 = scalar_select %p30, 0, %s29
      %s32 = sadd.s32 1, %s23
      %s33 = scalar_select %p30, %s32, %s23
      %p34 = scmp.ge.s32.totalorder %s33, 2
      %s35 = scalar_select %p34, 0, %s33
      %s36 = ssub.s32 %s23, %s35
      %s37 = ssub.s32 %s24, %s31
      %s38 = sor.u32 %s36, %s37
      %p39 = scmp.eq.s32.totalorder %s38, 0
      %s41 = sadd.s32 %s40, 1
      %s42 = scalar_select %p39, %s40, %s41
      %p45 = pneg %p39
      %p46 = scmp.eq.s32.totalorder %s16, 3
      %p47 = por %p45, %p46
      %p48 = scmp.ne.s32.totalorder %s40, %s43
      %p49 = scmp.eq.s32.totalorder %s16, 0
      %p50 = por %p48, %p49
      %p51 = scmp.ne.s32.totalorder %s40, %s43
      %p52 = scmp.eq.s32.totalorder %s21, 3
      %p53 = por %p51, %p52
      %p54 = scmp.ne.s32.totalorder %s43, %s44
      %p55 = scmp.eq.s32.totalorder %s21, 0
      %p56 = por %p54, %p55
      %p57 = scmp.ne.s32.totalorder %s43, %s44
      %p58 = scmp.eq.s32.totalorder %s22, 3
      %p59 = por %p57, %p58
      %p61 = scmp.ne.s32.totalorder %s44, %s60
      %p62 = scmp.eq.s32.totalorder %s22, 0
      %p63 = por %p61, %p62
      %s64 = ssub.s32 %s23, %s35
      %s65 = ssub.s32 %s24, %s31
      %s66 = sor.u32 %s64, %s65
      %p67 = scmp.eq.s32.totalorder %s66, 0
      %s69 = sadd.s32 %s68, 1
      %s70 = scalar_select %p67, %s68, %s69
      %p73 = pneg %p67
      %p74 = scmp.eq.s32.totalorder %s16, 3
      %p75 = por %p73, %p74
      %p76 = scmp.ne.s32.totalorder %s68, %s71
      %p77 = scmp.eq.s32.totalorder %s16, 0
      %p78 = por %p76, %p77
      %p79 = scmp.ne.s32.totalorder %s68, %s71
      %p80 = scmp.eq.s32.totalorder %s21, 3
      %p81 = por %p79, %p80
      %p82 = scmp.ne.s32.totalorder %s71, %s72
      %p83 = scmp.eq.s32.totalorder %s21, 0
      %p84 = por %p82, %p83
      %p85 = scmp.ne.s32.totalorder %s71, %s72
      %p86 = scmp.eq.s32.totalorder %s22, 3
      %p87 = por %p85, %p86
      %p89 = scmp.ne.s32.totalorder %s72, %s88
      %p90 = scmp.eq.s32.totalorder %s22, 0
      %p91 = por %p89, %p90
      %s92 = ssub.s32 %s23, %s35
      %p93 = scmp.eq.s32.totalorder %s92, 0
      %s95 = sadd.s32 %s94, 1
      %s96 = scalar_select %p93, %s94, %s95
      %p99 = pneg %p93
      %p100 = scmp.eq.s32.totalorder %s16, 3
      %p101 = por %p99, %p100
      %p102 = scmp.ne.s32.totalorder %s94, %s97
      %p103 = scmp.eq.s32.totalorder %s16, 0
      %p104 = por %p102, %p103
      %p105 = scmp.ne.s32.totalorder %s94, %s97
      %p106 = scmp.eq.s32.totalorder %s21, 3
      %p107 = por %p105, %p106
      %p108 = scmp.ne.s32.totalorder %s97, %s98
      %p109 = scmp.eq.s32.totalorder %s21, 0
      %p110 = por %p108, %p109
      %p111 = scmp.ne.s32.totalorder %s97, %s98
      %p112 = scmp.eq.s32.totalorder %s22, 3
      %p113 = por %p111, %p112
      %p115 = scmp.ne.s32.totalorder %s98, %s114
      %p116 = scmp.eq.s32.totalorder %s22, 0
      %p117 = por %p115, %p116
      %s118 = ssub.s32 %s23, %s35
      %p119 = scmp.eq.s32.totalorder %s118, 0
      %s121 = sadd.s32 %s120, 1
      %s122 = scalar_select %p119, %s120, %s121
      %p125 = pneg %p119
      %p126 = scmp.eq.s32.totalorder %s16, 3
      %p127 = por %p125, %p126
      %p128 = scmp.ne.s32.totalorder %s120, %s123
      %p129 = scmp.eq.s32.totalorder %s16, 0
      %p130 = por %p128, %p129
      %p131 = scmp.ne.s32.totalorder %s120, %s123
      %p132 = scmp.eq.s32.totalorder %s21, 3
      %p133 = por %p131, %p132
      %p134 = scmp.ne.s32.totalorder %s123, %s124
      %p135 = scmp.eq.s32.totalorder %s21, 0
      %p136 = por %p134, %p135
      %p137 = scmp.ne.s32.totalorder %s123, %s124
      %p138 = scmp.eq.s32.totalorder %s22, 3
      %p139 = por %p137, %p138
      %p141 = scmp.ne.s32.totalorder %s124, %s140
      %p142 = scmp.eq.s32.totalorder %s22, 0
      %p143 = por %p141, %p142
      %s144 = ssub.s32 %s23, %s35
      %s145 = ssub.s32 %s24, %s31
      %s146 = sor.u32 %s144, %s145
      %p147 = scmp.eq.s32.totalorder %s146, 0
      %s149 = sadd.s32 %s148, 1
      %s150 = scalar_select %p147, %s148, %s149
      %p153 = pneg %p147
      %p154 = scmp.eq.s32.totalorder %s16, 3
      %p155 = por %p153, %p154
      %p156 = scmp.ne.s32.totalorder %s148, %s151
      %p157 = scmp.eq.s32.totalorder %s16, 0
      %p158 = por %p156, %p157
      %p159 = scmp.ne.s32.totalorder %s148, %s151
      %p160 = scmp.eq.s32.totalorder %s21, 3
      %p161 = por %p159, %p160
      %p162 = scmp.ne.s32.totalorder %s151, %s152
      %p163 = scmp.eq.s32.totalorder %s21, 0
      %p164 = por %p162, %p163
      %p165 = scmp.ne.s32.totalorder %s151, %s152
      %p166 = scmp.eq.s32.totalorder %s22, 3
      %p167 = por %p165, %p166
      %p169 = scmp.ne.s32.totalorder %s152, %s168
      %p170 = scmp.eq.s32.totalorder %s22, 0
      %p171 = por %p169, %p170
      %p172 = scmp.le.s32.totalorder 1, %s16
      %p173 = scmp.lt.s32.totalorder %s16, 5
      %p174 = pnand %p172, %p173
      %p175 = pneg %p174
      // Predicated region
      $region9: #{tpu_custom_call.1} parent=5 // pred_check
        _
      $region10: #{tpu_custom_call.1} parent=5 // pred_check_branch
        %177 = sbr.rel (%p174) target = $region12
      $region11: #{tpu_custom_call.1} parent=5 // pred_region
        %s178 = ssub.s32 %s16, 1
      $region12: #{tpu_custom_call.1} parent=5 // pred_fallthru
        _
      %p179 = scmp.lt.s32.totalorder %s16, 4
      // Predicated region
      $region13: #{tpu_custom_call.1} parent=5 // pred_check
        %p180 = pneg %p179
      $region14: #{tpu_custom_call.1} parent=5 // pred_check_branch
        %182 = sbr.rel (%p180) target = $region16
      $region15: #{tpu_custom_call.1} parent=5 // pred_region
        // Predicated region
        $region17: #{tpu_custom_call.1} parent=15 // pred_check
          %p183 = pneg %p50
        $region18: #{tpu_custom_call.1} parent=15 // pred_check_branch
          %185 = sbr.rel (%p183) target = $region20
        $region19: #{tpu_custom_call.1} parent=15 // pred_region
          %p186 = scmp.lt.s32.totalorder %s23, 1
          %s187 = scalar_select %p186, %s23, 1
          %p188 = scmp.lt.s32.totalorder %s24, 1
          %s189 = scalar_select %p188, %s24, 1
          %s190 = smul.addr %s187, 2
          %s191 = sadd.s32 %s189, %s190
          %s192 = smul.addr %s191, 8
          %s193 = scalar_lea.vmem %s0, %s192
        $region20: #{tpu_custom_call.1} parent=15 // pred_fallthru
          _
        // Predicated region
        $region21: #{tpu_custom_call.1} parent=15 // pred_check
          %p194 = pneg %p78
        $region22: #{tpu_custom_call.1} parent=15 // pred_check_branch
          %196 = sbr.rel (%p194) target = $region24
        $region23: #{tpu_custom_call.1} parent=15 // pred_region
          %p197 = scmp.lt.s32.totalorder %s23, 1
          %s198 = scalar_select %p197, %s23, 1
          %p199 = scmp.lt.s32.totalorder %s24, 1
          %s200 = scalar_select %p199, %s24, 1
          %s201 = smul.addr %s198, 2
          %s202 = sadd.s32 %s200, %s201
          %s203 = smul.addr %s202, 4
          %s204 = scalar_lea.vmem %s1, %s203
        $region24: #{tpu_custom_call.1} parent=15 // pred_fallthru
          _
        // Predicated region
        $region25: #{tpu_custom_call.1} parent=15 // pred_check
          %p205 = pneg %p104
        $region26: #{tpu_custom_call.1} parent=15 // pred_check_branch
          %207 = sbr.rel (%p205) target = $region28
        $region27: #{tpu_custom_call.1} parent=15 // pred_region
          %s208 = sand.u32 %s94, 1
          %s209 = scalar_lea.sflag [#allocation3], %s208
          %s210 = sand.u32 %s94, 1
          %s211 = smul.addr %s210, 8
          %s212 = scalar_lea.vmem [#allocation2], %s211
          %s214 = ssub.s32 128, 128
          %215 = vsyncadd %s209, %s214
          %s216 = smul.addr %s23, 128
          %s217 = scalar_lea.hbm %s2, %s216
          %s219 = sshll.u32 %s212, 4
          %s220 = int_to_ptr.vmem [resolvable:$true] %s219
          %222 = dma.hbm_to_vmem [thread:$0]  %s217, 128, %s220, %s209
        $region28: #{tpu_custom_call.1} parent=15 // pred_fallthru
          _
        // Predicated region
        $region29: #{tpu_custom_call.1} parent=15 // pred_check
          %p223 = pneg %p130
        $region30: #{tpu_custom_call.1} parent=15 // pred_check_branch
          %225 = sbr.rel (%p223) target = $region32
        $region31: #{tpu_custom_call.1} parent=15 // pred_region
          %p226 = scmp.lt.s32.totalorder %s23, 1
          %s227 = scalar_select %p226, %s23, 1
          %s228 = smul.addr %s227, 4
          %s229 = smul.addr %s228, 4
          %s230 = scalar_lea.vmem %s3, %s229
        $region32: #{tpu_custom_call.1} parent=15 // pred_fallthru
          _
      $region16: #{tpu_custom_call.1} parent=5 // pred_fallthru
        _
      %p231 = scmp.le.s32.totalorder 1, %s16
      %p232 = scmp.lt.s32.totalorder %s16, 5
      %p233 = pnand %p231, %p232
      %p234 = pneg %p233
      // Predicated region
      $region33: #{tpu_custom_call.1} parent=5 // pred_check
        _
      $region34: #{tpu_custom_call.1} parent=5 // pred_check_branch
        %236 = sbr.rel (%p233) target = $region36
      $region35: #{tpu_custom_call.1} parent=5 // pred_region
        %s237 = ssub.s32 %s16, 1
        %s238 = sand.u32 %s97, 1
        %s239 = scalar_lea.sflag [#allocation3], %s238
        %s240 = sand.u32 %s97, 1
        %s241 = smul.addr %s240, 8
        %s242 = scalar_lea.vmem [#allocation2], %s241
        // Predicated region
        $region37: #{tpu_custom_call.1} parent=35 // pred_check
          %p243 = pneg %p110
        $region38: #{tpu_custom_call.1} parent=35 // pred_check_branch
          %245 = sbr.rel (%p243) target = $region40
        $region39: #{tpu_custom_call.1} parent=35 // pred_region
          %246 = dma.done %s239, 128
        $region40: #{tpu_custom_call.1} parent=35 // pred_fallthru
          _
        %p247 = scmp.lt.s32.totalorder %s25, 1
        %s248 = scalar_select %p247, %s25, 1
        %p249 = scmp.lt.s32.totalorder %s26, 1
        %s250 = scalar_select %p249, %s26, 1
        %s251 = smul.addr %s248, 2
        %s252 = sadd.s32 %s250, %s251
        %s253 = smul.addr %s252, 8
        %s254 = scalar_lea.vmem %s0, %s253
        %p255 = pneg %p56
        %p256 = pneg %p53
        %p257 = scmp.lt.s32.totalorder %s25, 1
        %s258 = scalar_select %p257, %s25, 1
        %p259 = scmp.lt.s32.totalorder %s26, 1
        %s260 = scalar_select %p259, %s26, 1
        %s261 = smul.addr %s258, 2
        %s262 = sadd.s32 %s260, %s261
        %s263 = smul.addr %s262, 4
        %s264 = scalar_lea.vmem %s1, %s263
        %p265 = pneg %p84
        %p266 = pneg %p81
        %s267 = sand.u32 %s97, 1
        %s268 = scalar_lea.sflag [#allocation3], %s267
        %s269 = sand.u32 %s97, 1
        %s270 = smul.addr %s269, 8
        %s271 = scalar_lea.vmem [#allocation2], %s270
        %p272 = pneg %p110
        %p273 = pneg %p107
        %p274 = scmp.lt.s32.totalorder %s25, 1
        %s275 = scalar_select %p274, %s25, 1
        %s276 = smul.addr %s275, 4
        %s277 = smul.addr %s276, 4
        %s278 = scalar_lea.vmem %s3, %s277
        %p279 = pneg %p136
        %p280 = pneg %p133
        %p281 = pneg %p164
        %p282 = pneg %p161
        %s283 = sand.u32 %s151, 1
        %s284 = scalar_lea.sflag [#allocation4], %s283
        %s285 = sand.u32 %s151, 1
        %s286 = smul.addr %s285, 4
        %s287 = scalar_lea.vmem [#allocation5], %s286
        %p288 = scmp.lt.s32.totalorder %s25, 1
        %s289 = scalar_select %p288, %s25, 1
        %p290 = scmp.lt.s32.totalorder %s26, 1
        %s291 = scalar_select %p290, %s26, 1
        %s292 = smul.addr %s289, 2
        %s293 = sadd.s32 %s291, %s292
        %s294 = smul.addr %s293, 8
        %s295 = scalar_lea.vmem %s0, %s294
        %p296 = scmp.lt.s32.totalorder %s25, 1
        %s297 = scalar_select %p296, %s25, 1
        %p298 = scmp.lt.s32.totalorder %s26, 1
        %s299 = scalar_select %p298, %s26, 1
        %s300 = smul.addr %s297, 2
        %s301 = sadd.s32 %s299, %s300
        %s302 = smul.addr %s301, 4
        %s303 = scalar_lea.vmem %s1, %s302
        %p304 = scmp.lt.s32.totalorder %s25, 1
        %s305 = scalar_select %p304, %s25, 1
        %s306 = smul.addr %s305, 4
        %s307 = smul.addr %s306, 4
        %s308 = scalar_lea.vmem %s3, %s307
        %v310 = vld [vmem:[%s242] sm:$0xff]
        %v311 = vld [vmem:[%s295] sm:$0xff]
        %313 = vset.pattern.permute.xlu0 0
        %314 = vperm.xlu0 %313, %v311
        %v315 = vpop.permute.xlu0 %314
        %v317 = vlaneseq
        %v318 = vshrl.u32 %v317, 7
        %v319 = vsub.s32 0, %v318
        %v320 = vrot.slane %v310, %v319
        %v321 = vsub.f32 %v315, %v320
        %v322 = vand.u32 2147483647, %v321
        %323 = vset.pattern.permute.xlu0 1
        %324 = vperm.xlu0 %323, %v311
        %v325 = vpop.permute.xlu0 %324
        %v327 = vlaneseq
        %v328 = vshrl.u32 %v327, 7
        %v329 = vsub.s32 1, %v328
        %v330 = vrot.slane %v310, %v329
        %v331 = vsub.f32 %v325, %v330
        %v332 = vand.u32 2147483647, %v331
        %v333 = vadd.f32 %v322, %v332
        %v334 = vadd.f32 %v333, 1.0
        %v335 = vrcp.pop %v334
        %v336 = vlaneseq
        %v337 = vshrl.u32 %v336, 7
        %v338 = vsub.s32 2, %v337
        %v339 = vrot.slane %v310, %v338
        %v340 = vmul.f32 %v339, %v335
        %v341 = vld [vmem:[%s303] sm:$0xf]
        %v342 = vld [vmem:[%s308] sm:$0xf]
        %v343 = vld [vmem:[%s308 + $0x4] sm:$0xf]
        %v344 = vld [vmem:[%s308 + $0x8] sm:$0xf]
        %v345 = vld [vmem:[%s308 + $0xc] sm:$0xf]
        %v350 = vunpack.c.l.b16 %v342
        %v351 = vunpack.c.l.b16 %v343
        %v352 = vunpack.c.l.b16 %v344
        %v353 = vunpack.c.l.b16 %v345
        %v354 = vpack.c.b16 %v351, %v350
        %v355 = vpack.c.b16 %v353, %v352
        %vm358 = vcmask 261120
        %v360 = vsel %vm358, %v341, 0
        %362 = vmatprep.subr.bf16.mxu0 0
        %363 = vmatpush1.bf16.msra.mxu0 0
        %364 = vmatprep.subr.bf16.mxu0 0
        %365 = vmatpush1.bf16.msra.mxu0 0
        %366 = vmatprep.subr.bf16.mxu0 0
        %367 = vmatpush1.bf16.msra.mxu0 0
        %368 = vmatprep.subr.bf16.mxu0 0
        %369 = vmatpush1.bf16.msra.mxu0 0
        %370 = vmatprep.subr.bf16.mxu0 0
        %371 = vmatpush1.bf16.msra.mxu0 0
        %372 = vmatprep.subr.bf16.mxu0 0
        %373 = vmatpush1.bf16.msra.mxu0 0
        %374 = vmatprep.subr.bf16.mxu0 0
        %375 = vmatpush1.bf16.msra.mxu0 %v355
        %376 = vmatprep.subr.bf16.mxu0 0
        %377 = vmatpush1.bf16.msra.mxu0 %v354
        %378 = vmatprep.subr.bf16.mxu0 0
        %379 = vmatpush2.bf16.msra.mxu0 0
        %380 = vmatprep.subr.bf16.mxu0 0
        %381 = vmatpush2.bf16.msra.mxu0 0
        %382 = vmatprep.subr.bf16.mxu0 0
        %383 = vmatpush2.bf16.msra.mxu0 0
        %384 = vmatprep.subr.bf16.mxu0 0
        %385 = vmatpush2.bf16.msra.mxu0 0
        %386 = vmatprep.subr.bf16.mxu0 0
        %387 = vmatpush2.bf16.msra.mxu0 0
        %388 = vmatprep.subr.bf16.mxu0 0
        %389 = vmatpush2.bf16.msra.mxu0 0
        %390 = vmatprep.subr.bf16.mxu0 0
        %391 = vmatpush2.bf16.msra.mxu0 0
        %392 = vmatprep.subr.bf16.mxu0 0
        %393 = vmatpush2.bf16.msra.mxu0 0
        %394 = vmatprep.mubr.bf16.mxu0 0
        %395 = vmatmul.mubr.bf16.gmra.mxu0 %v360
        %v396 = vpop.f32.mrf.mxu0
        %v397 = vadd.f32 0.0, %v396
        %v398 = vpop.f32.mrf.mxu0
        %v399 = vpop.f32.mrf.mxu0
        %v400 = vpop.f32.mrf.mxu0
        %401 = vdwg.mxu0
        %402 = vset.pattern.permute.xlu0 6
        %403 = vperm.xlu0 %402, %v311
        %v404 = vpop.permute.xlu0 %403
        %v406 = vmul.f32 %v397, %v404
        %v407 = vlaneseq
        %v408 = vshrl.u32 %v407, 7
        %v409 = vsub.s32 3, %v408
        %v410 = vrot.slane %v310, %v409
        %v411 = vmul.f32 %v406, %v410
        %vm412 = vcmp.gt.f32.partialorder %v411, 0.0
        %v413 = vmax.f32 %v411, 1e-30
        %v414 = vlog2.pop %v413
        %v415 = vmul.f32 %v414, 0.6931472
        %v416 = vmul.f32 %v415, 0.6
        %v417 = vmul.f32 %v416, 1.442695
        %v418 = vpow.pop %v417
        %v419 = vsel %vm412, %v418, 0.0
        %420 = vrot.lane.b32.xlu0 %v311, 2
        %v421 = vpop.permute.xlu0 %420
        %v423 = vsub.f32 %v311, %v421
        %425 = vrot.lane.b32.xlu0 %v423, 127
        %v426 = vpop.permute.xlu0 %425
        %v428 = vmul.f32 %v423, %v426
        %v430 = vrot.slane %v310, 6
        %v432 = vsub.f32 %v310, %v430
        %v434 = vrot.slane %v432, 1
        %v436 = vmul.f32 %v432, %v434
        %437 = vset.pattern.permute.xlu0 4
        %438 = vperm.xlu0 %437, %v311
        %v439 = vpop.permute.xlu0 %438
        %v441 = vlaneseq
        %v442 = vshrl.u32 %v441, 7
        %v443 = vsub.s32 6, %v442
        %v444 = vrot.slane %v310, %v443
        %v445 = vmin.f32 %v439, %v444
        %446 = vset.pattern.permute.xlu0 2
        %447 = vperm.xlu0 %446, %v311
        %v448 = vpop.permute.xlu0 %447
        %v450 = vlaneseq
        %v451 = vshrl.u32 %v450, 7
        %v452 = vsub.s32 4, %v451
        %v453 = vrot.slane %v310, %v452
        %v454 = vmax.f32 %v448, %v453
        %v455 = vsub.f32 %v445, %v454
        %v456 = vmax.f32 %v455, 0.0
        %457 = vset.pattern.permute.xlu0 5
        %458 = vperm.xlu0 %457, %v311
        %v459 = vpop.permute.xlu0 %458
        %v461 = vlaneseq
        %v462 = vshrl.u32 %v461, 7
        %v463 = vsub.s32 7, %v462
        %v464 = vrot.slane %v310, %v463
        %v465 = vmin.f32 %v459, %v464
        %466 = vset.pattern.permute.xlu0 3
        %467 = vperm.xlu0 %466, %v311
        %v468 = vpop.permute.xlu0 %467
        %v470 = vlaneseq
        %v471 = vshrl.u32 %v470, 7
        %v472 = vsub.s32 5, %v471
        %v473 = vrot.slane %v310, %v472
        %v474 = vmax.f32 %v468, %v473
        %v475 = vsub.f32 %v465, %v474
        %v476 = vmax.f32 %v475, 0.0
        %v477 = vmul.f32 %v456, %v476
        %479 = vset.pattern.permute.xlu0 4
        %480 = vperm.xlu0 %479, %v428
        %v481 = vpop.permute.xlu0 %480
        %v483 = vlaneseq
        %v484 = vshrl.u32 %v483, 7
        %v485 = vsub.s32 6, %v484
        %v486 = vrot.slane %v436, %v485
        %v487 = vadd.f32 %v481, %v486
        %v488 = vsub.f32 %v487, %v477
        %v489 = vmax.f32 %v488, 1e-09
        %v490 = vrcp.pop %v489
        %v491 = vmul.f32 %v477, %v490
        %v492 = vmax.f32 %v439, %v444
        %v493 = vmin.f32 %v448, %v453
        %v494 = vsub.f32 %v492, %v493
        %v495 = vmax.f32 %v459, %v464
        %v496 = vmin.f32 %v468, %v473
        %v497 = vsub.f32 %v495, %v496
        %v498 = vmul.f32 %v494, %v497
        %v499 = vsub.f32 %v498, %v488
        %v500 = vmax.f32 %v498, 1e-09
        %v501 = vrcp.pop %v500
        %v502 = vmul.f32 %v499, %v501
        %v503 = vsub.f32 %v491, %v502
        %v504 = vmax.f32 %v503, 0.0
        %v505 = vmul.f32 %v419, %v504
        %v506 = vmul.f32 %v505, %v340
        %v507 = vlaneseq
        %v508 = vand.u32 %v507, 127
        %vm509 = vcmp.lt.s32.totalorder %v508, 8
        %v510 = vsel %vm509, %v506, -inf
        %v511 = vpack.c.bf16 %v510, %v510
        %512 = vst [vmem:[%s287] sm:$0xf] %v511
        %s513 = sand.u32 %s151, 1
        %s514 = scalar_lea.sflag [#allocation4], %s513
        %s515 = sand.u32 %s151, 1
        %s516 = smul.addr %s515, 4
        %s517 = scalar_lea.vmem [#allocation5], %s516
        // Predicated region
        $region41: #{tpu_custom_call.1} parent=35 // pred_check
          %p518 = pneg %p161
        $region42: #{tpu_custom_call.1} parent=35 // pred_check_branch
          %520 = sbr.rel (%p518) target = $region44
        $region43: #{tpu_custom_call.1} parent=35 // pred_region
          %s522 = ssub.s32 64, 64
          %523 = vsyncadd %s514, %s522
          %s524 = smul.addr %s25, 2
          %s525 = sadd.s32 %s26, %s524
          %s526 = smul.addr %s525, 64
          %s527 = scalar_lea.hbm %s4, %s526
          %s529 = sshll.u32 %s517, 4
          %s530 = int_to_ptr.vmem [resolvable:$true] %s529
          %532 = dma.vmem_to_hbm [thread:$0]  %s530, 64, %s527, %s514
        $region44: #{tpu_custom_call.1} parent=35 // pred_fallthru
          _
      $region36: #{tpu_custom_call.1} parent=5 // pred_fallthru
        _
      %p533 = scmp.le.s32.totalorder 2, %s16
      // Predicated region
      $region45: #{tpu_custom_call.1} parent=5 // pred_check
        %p534 = pneg %p533
      $region46: #{tpu_custom_call.1} parent=5 // pred_check_branch
        %536 = sbr.rel (%p534) target = $region48
      $region47: #{tpu_custom_call.1} parent=5 // pred_region
        %s537 = ssub.s32 %s16, 2
        // Predicated region
        $region49: #{tpu_custom_call.1} parent=47 // pred_check
          %p538 = pneg %p167
        $region50: #{tpu_custom_call.1} parent=47 // pred_check_branch
          %540 = sbr.rel (%p538) target = $region52
        $region51: #{tpu_custom_call.1} parent=47 // pred_region
          %s541 = sand.u32 %s152, 1
          %s542 = scalar_lea.sflag [#allocation4], %s541
          %s543 = sand.u32 %s152, 1
          %s544 = smul.addr %s543, 4
          %s545 = scalar_lea.vmem [#allocation5], %s544
          %546 = dma.done %s542, 64
        $region52: #{tpu_custom_call.1} parent=47 // pred_fallthru
          _
      $region48: #{tpu_custom_call.1} parent=5 // pred_fallthru
        _
    $region6: #{tpu_custom_call.1} parent=1 // loop_footer
      %s20 = sadd.s32 1, %s16
    $region7: #{tpu_custom_call.1} parent=1 // loop_footer_branch
      %15 = sbr.rel target = $region3
    $region8: #{tpu_custom_call.1} parent=1 // loop_exit
      _
    %547 = vsyncpa [#allocation3], 1
    %s548 = scalar_lea.sflag [#allocation3], 1
    %549 = vsyncpa %s548, 1
    %550 = vsyncpa [#allocation4], 1
    %s551 = scalar_lea.sflag [#allocation4], 1
    %552 = vsyncpa %s551, 1

</llo_original>
